<compile_context>
chip_gen: v7x
topology: tpu7x:2x2x1
jax: 0.10.0
libtpu: 0.0.40
codegen_flags: <defaults>
</compile_context>

<pallas_src>
import functools

import jax
import jax.numpy as jnp
from jax import lax
from jax.experimental import pallas as pl
from jax.experimental.pallas import tpu as pltpu

LANE = 128  # TPU lane width


def _round_up(x, m):
    return ((x + m - 1) // m) * m


def _actor_critic_kernel(x_ref, w_ref, b_ref, out_ref, *, out_dim):
    """Fused actor+critic MLP on one batch tile.

    x_ref   : [bm, 128]   states (features in lanes 0..in_dim-1, rest zero)
    w_ref   : [384, 128]  packed weights (rows 0..127 = W1, 128..255 = W2, 256..383 = W3)
    b_ref   : [8, 128]    packed biases (row 0 = b1, row 1 = b2, row 2 = b3)
    out_ref : [bm, 128]   lanes 0..out_dim-1 = softmax probs, lane out_dim = value, rest 0
    """
    x = x_ref[...]
    w1 = w_ref[0:LANE, :]
    w2 = w_ref[LANE:2 * LANE, :]
    w3 = w_ref[2 * LANE:3 * LANE, :]
    b1 = b_ref[0:1, :]
    b2 = b_ref[1:2, :]
    b3 = b_ref[2:3, :]

    # Layer 1 (actor & critic fused along the output/lane axis).
    h = jnp.tanh(jnp.dot(x, w1, preferred_element_type=jnp.float32) + b1)
    # Layer 2 (block-diagonal weights keep the two heads independent).
    h = jnp.tanh(jnp.dot(h, w2, preferred_element_type=jnp.float32) + b2)
    # Layer 3: lanes 0..out_dim-1 = actor logits, lane out_dim = critic value.
    y = jnp.dot(h, w3, preferred_element_type=jnp.float32) + b3

    lane_idx = lax.broadcasted_iota(jnp.int32, y.shape, 1)
    is_logit = lane_idx < out_dim

    # Masked softmax over the logit lanes (dim=1 of the original module).
    masked = jnp.where(is_logit, y, jnp.float32(-1e30))
    m = jnp.max(masked, axis=1, keepdims=True)
    e = jnp.exp(masked - m)                       # exactly 0 on non-logit lanes
    denom = jnp.sum(e, axis=1, keepdims=True)
    probs = e / denom                             # exact f32 division (rows sum to 1)

    # Lane-dense output: probs in lanes < out_dim, value at lane == out_dim, 0 elsewhere.
    out_ref[...] = jnp.where(lane_idx == out_dim, y, probs)


def pack_params(params):
    """Pack the 12 Linear weights/biases into one weight slab and one bias slab.

    Done once (outside the rollout loop); the packed arrays are what the kernel
    consumes.  Weights stored as [fan_in, fan_out] (y = x @ W + b).
    """
    in_dim, H = params["aw1"].shape
    out_dim = params["aw3"].shape[1]
    assert in_dim <= LANE and 2 * H <= LANE and out_dim + 1 <= LANE, (
        "this packing assumes in_dim, 2*hidden, out_dim+1 all fit in 128 lanes")

    def pad2d(a, rows, cols):
        return jnp.zeros((rows, cols), jnp.float32).at[: a.shape[0], : a.shape[1]].set(a)

    # Layer 1: [aw1 | cw1] -> [in_dim, 2H]
    w1f = jnp.concatenate([params["aw1"], params["cw1"]], axis=1)
    b1f = jnp.concatenate([params["ab1"], params["cb1"]], axis=1)
    # Layer 2: block-diagonal [2H, 2H]
    w2f = (jnp.zeros((2 * H, 2 * H), jnp.float32)
           .at[:H, :H].set(params["aw2"])
           .at[H:, H:].set(params["cw2"]))
    b2f = jnp.concatenate([params["ab2"], params["cb2"]], axis=1)
    # Layer 3: [2H, out_dim+1] -- actor logits in cols :out_dim, critic value in col out_dim
    w3f = (jnp.zeros((2 * H, out_dim + 1), jnp.float32)
           .at[:H, :out_dim].set(params["aw3"])
           .at[H:, out_dim:].set(params["cw3"]))
    b3f = jnp.concatenate([params["ab3"], params["cb3"]], axis=1)

    w_slab = jnp.concatenate(
        [pad2d(w1f, LANE, LANE), pad2d(w2f, LANE, LANE), pad2d(w3f, LANE, LANE)], axis=0
    )  # [384, 128]
    b_slab = (jnp.zeros((8, LANE), jnp.float32)
              .at[0, : 2 * H].set(b1f[0])
              .at[1, : 2 * H].set(b2f[0])
              .at[2, : out_dim + 1].set(b3f[0]))  # [8, 128]

    return {"w": w_slab, "b": b_slab,
            "in_dim": in_dim, "hidden": H, "out_dim": out_dim}


def actor_critic_forward(x, packed):
    """Run actor+critic forward for a batch of states in one Pallas kernel.

    Args:
      x:      [B, in_dim] float32 states.
      packed: output of pack_params().

    Returns:
      probs: [B, out_dim] softmax action probabilities.
      value: [B, 1] critic value estimates.
    """
    B, in_dim = x.shape
    assert in_dim == packed["in_dim"]
    out_dim = packed["out_dim"]

    # Batch tile: 128 rows for large batches (fills MXU M and splits across
    # v7x's two TensorCores via the "parallel" grid axis), else pad B up to 8.
    bm = 128 if B >= 128 else _round_up(B, 8)
    B_pad = _round_up(B, bm)

    # Lane-dense, zero-padded input slab.
    x_p = jnp.zeros((B_pad, LANE), jnp.float32).at[:B, :in_dim].set(x)

    kernel = functools.partial(_actor_critic_kernel, out_dim=out_dim)
    out = pl.pallas_call(
        kernel,
        out_shape=jax.ShapeDtypeStruct((B_pad, LANE), jnp.float32),
        grid=(B_pad // bm,),
        in_specs=[
            pl.BlockSpec((bm, LANE), lambda i: (i, 0)),            # x tile
            pl.BlockSpec((3 * LANE, LANE), lambda i: (0, 0)),       # weights (resident)
            pl.BlockSpec((8, LANE), lambda i: (0, 0)),              # biases  (resident)
        ],
        out_specs=pl.BlockSpec((bm, LANE), lambda i: (i, 0)),
        compiler_params=pltpu.CompilerParams(
            dimension_semantics=("parallel",)),
    )(x_p, packed["w"], packed["b"])

    probs = out[:B, :out_dim]
    value = out[:B, out_dim:out_dim + 1]
    return probs, value


def init_params(key, in_dim, hidden_dim, out_dim):
    """PyTorch-Linear-style init: U(-1/sqrt(fan_in), 1/sqrt(fan_in))."""
    keys = jax.random.split(key, 12)

    def linear(kw, kb, fan_in, fan_out):
        bound = 1.0 / jnp.sqrt(jnp.asarray(fan_in, jnp.float32))
        w = jax.random.uniform(kw, (fan_in, fan_out), jnp.float32, -bound, bound)
        b = jax.random.uniform(kb, (1, fan_out), jnp.float32, -bound, bound)
        return w, b

    aw1, ab1 = linear(keys[0], keys[1], in_dim, hidden_dim)
    aw2, ab2 = linear(keys[2], keys[3], hidden_dim, hidden_dim)
    aw3, ab3 = linear(keys[4], keys[5], hidden_dim, out_dim)
    cw1, cb1 = linear(keys[6], keys[7], in_dim, hidden_dim)
    cw2, cb2 = linear(keys[8], keys[9], hidden_dim, hidden_dim)
    cw3, cb3 = linear(keys[10], keys[11], hidden_dim, 1)

    return dict(
        aw1=aw1, ab1=ab1, aw2=aw2, ab2=ab2, aw3=aw3, ab3=ab3,
        cw1=cw1, cb1=cb1, cw2=cw2, cb2=cb2, cw3=cw3, cb3=cb3,
    )


def reference_forward(x, p):
    """Pure-JAX reference for correctness checking."""
    h = jnp.tanh(x @ p["aw1"] + p["ab1"])
    h = jnp.tanh(h @ p["aw2"] + p["ab2"])
    logits = h @ p["aw3"] + p["ab3"]
    probs = jax.nn.softmax(logits, axis=1)
    c = jnp.tanh(x @ p["cw1"] + p["cb1"])
    c = jnp.tanh(c @ p["cw2"] + p["cb2"])
    value = c @ p["cw3"] + p["cb3"]
    return probs, value


if __name__ == "__main__":
    # Small shapes consistent with the module (a batch of environment states).
    B, IN_DIM, HIDDEN, OUT_DIM = 8, 16, 32, 4

    key = jax.random.PRNGKey(0)
    k_param, k_state, k_state2 = jax.random.split(key, 3)

    params = init_params(k_param, IN_DIM, HIDDEN, OUT_DIM)
    packed = pack_params(params)

    # --- small batch (B=8, single tile) ---
    states = jax.random.normal(k_state, (B, IN_DIM), jnp.float32)
    probs, value = jax.block_until_ready(actor_critic_forward(states, packed))
    ref_probs, ref_value = reference_forward(states, params)
    assert jnp.allclose(probs, ref_probs, atol=2e-3), "probs mismatch (B=8)"
    assert jnp.allclose(value, ref_value, atol=1e-3), "value mismatch (B=8)"
    # exact-division softmax: rows sum to 1 to f32 rounding
    assert jnp.allclose(jnp.sum(probs, axis=1), 1.0, atol=1e-4), "probs do not sum to 1"

    # --- rollout-style batch (exercises grid > 1 and batch padding) ---
    B2 = 200
    states2 = jax.random.normal(k_state2, (B2, IN_DIM), jnp.float32)
    probs2, value2 = jax.block_until_ready(actor_critic_forward(states2, packed))
    ref_probs2, ref_value2 = reference_forward(states2, params)
    assert jnp.allclose(probs2, ref_probs2, atol=2e-3), "probs mismatch (B=200)"
    assert jnp.allclose(value2, ref_value2, atol=1e-3), "value mismatch (B=200)"
    assert jnp.allclose(jnp.sum(probs2, axis=1), 1.0, atol=1e-4), "probs do not sum to 1 (B=200)"

    # TODO(synk): Categorical sampling / log_prob / entropy in act()/evaluate_action()
    # are host-side distribution utilities, not network compute; only the fused
    # actor+critic MLP forward is implemented in Pallas.
    print("KERNEL_OK")
</pallas_src>

<mosaic_0001>
module attributes {stable_mosaic.version = 11 : i64} {
  func.func @_actor_critic_kernel(%arg0: i32, %arg1: memref<8x128xf32, #tpu.memory_space<vmem>>, %arg2: memref<384x128xf32, #tpu.memory_space<vmem>>, %arg3: memref<8x128xf32, #tpu.memory_space<vmem>>, %arg4: memref<8x128xf32, #tpu.memory_space<vmem>>) attributes {dimension_semantics = [#tpu.dimension_semantics<parallel>], iteration_bounds = array<i64: 1>, scalar_prefetch = 0 : i64, scratch_operands = 0 : i64, tpu.core_type = #tpu.core_type<tc>, window_params = [{transform_indices = @transform_0, window_bounds = array<i64: 8, 128>}, {pipeline_mode = #tpu.pipeline_mode<synchronous>, transform_indices = @transform_1, window_bounds = array<i64: 384, 128>}, {pipeline_mode = #tpu.pipeline_mode<synchronous>, transform_indices = @transform_2, window_bounds = array<i64: 8, 128>}, {transform_indices = @transform_3, window_bounds = array<i64: 8, 128>}]} {
    %c0 = arith.constant 0 : index
    %c0_0 = arith.constant 0 : index
    %0 = vector.load %arg1[%c0, %c0_0] : memref<8x128xf32, #tpu.memory_space<vmem>>, vector<8x128xf32>
    %c0_1 = arith.constant 0 : index
    %c0_2 = arith.constant 0 : index
    %1 = vector.load %arg2[%c0_1, %c0_2] : memref<384x128xf32, #tpu.memory_space<vmem>>, vector<128x128xf32>
    %c128 = arith.constant 128 : index
    %c0_3 = arith.constant 0 : index
    %2 = vector.load %arg2[%c128, %c0_3] : memref<384x128xf32, #tpu.memory_space<vmem>>, vector<128x128xf32>
    %c256 = arith.constant 256 : index
    %c0_4 = arith.constant 0 : index
    %3 = vector.load %arg2[%c256, %c0_4] : memref<384x128xf32, #tpu.memory_space<vmem>>, vector<128x128xf32>
    %c0_5 = arith.constant 0 : index
    %c0_6 = arith.constant 0 : index
    %4 = vector.load %arg3[%c0_5, %c0_6] : memref<8x128xf32, #tpu.memory_space<vmem>>, vector<1x128xf32>
    %c1 = arith.constant 1 : index
    %c0_7 = arith.constant 0 : index
    %5 = vector.load %arg3[%c1, %c0_7] : memref<8x128xf32, #tpu.memory_space<vmem>>, vector<1x128xf32>
    %c2 = arith.constant 2 : index
    %c0_8 = arith.constant 0 : index
    %6 = vector.load %arg3[%c2, %c0_8] : memref<8x128xf32, #tpu.memory_space<vmem>>, vector<1x128xf32>
    %cst = arith.constant dense<0.000000e+00> : vector<8x128xf32>
    %7 = tpu.matmul %0, %1, %cst {dimension_numbers = #tpu.dot_dimension_numbers<[1], [0], [0], [1], [0, 0, 1, 1], [], []>} : vector<8x128xf32>, vector<128x128xf32>, vector<8x128xf32> -> vector<8x128xf32>
    %8 = vector.broadcast %4 : vector<1x128xf32> to vector<8x128xf32>
    %9 = arith.addf %7, %8 : vector<8x128xf32>
    %10 = math.tanh %9 : vector<8x128xf32>
    %cst_9 = arith.constant dense<0.000000e+00> : vector<8x128xf32>
    %11 = tpu.matmul %10, %2, %cst_9 {dimension_numbers = #tpu.dot_dimension_numbers<[1], [0], [0], [1], [0, 0, 1, 1], [], []>} : vector<8x128xf32>, vector<128x128xf32>, vector<8x128xf32> -> vector<8x128xf32>
    %12 = vector.broadcast %5 : vector<1x128xf32> to vector<8x128xf32>
    %13 = arith.addf %11, %12 : vector<8x128xf32>
    %14 = math.tanh %13 : vector<8x128xf32>
    %cst_10 = arith.constant dense<0.000000e+00> : vector<8x128xf32>
    %15 = tpu.matmul %14, %3, %cst_10 {dimension_numbers = #tpu.dot_dimension_numbers<[1], [0], [0], [1], [0, 0, 1, 1], [], []>} : vector<8x128xf32>, vector<128x128xf32>, vector<8x128xf32> -> vector<8x128xf32>
    %16 = vector.broadcast %6 : vector<1x128xf32> to vector<8x128xf32>
    %17 = arith.addf %15, %16 : vector<8x128xf32>
    %18 = tpu.iota {dimensions = array<i32: 1>} : vector<8x128xi32>
    %c4_i32 = arith.constant 4 : i32
    %19 = vector.broadcast %c4_i32 : i32 to vector<8x128xi32>
    %20 = arith.cmpi slt, %18, %19 : vector<8x128xi32>
    %cst_11 = arith.constant -1.000000e+30 : f32
    %21 = vector.broadcast %cst_11 : f32 to vector<8x128xf32>
    %22 = arith.select %20, %17, %21 : vector<8x128xi1>, vector<8x128xf32>
    %cst_12 = arith.constant dense<0xFF800000> : vector<8xf32>
    %23 = vector.multi_reduction <maximumf>, %22, %cst_12 [1] : vector<8x128xf32> to vector<8xf32>
    %24 = vector.shape_cast %23 : vector<8xf32> to vector<8x1xf32>
    %25 = vector.broadcast %24 : vector<8x1xf32> to vector<8x128xf32>
    %26 = arith.subf %22, %25 : vector<8x128xf32>
    %27 = math.exp %26 : vector<8x128xf32>
    %cst_13 = arith.constant dense<0.000000e+00> : vector<8xf32>
    %28 = vector.multi_reduction <add>, %27, %cst_13 [1] : vector<8x128xf32> to vector<8xf32>
    %29 = vector.shape_cast %28 : vector<8xf32> to vector<8x1xf32>
    %30 = vector.broadcast %29 : vector<8x1xf32> to vector<8x128xf32>
    %31 = arith.divf %27, %30 : vector<8x128xf32>
    %c4_i32_14 = arith.constant 4 : i32
    %32 = vector.broadcast %c4_i32_14 : i32 to vector<8x128xi32>
    %33 = arith.cmpi eq, %18, %32 : vector<8x128xi32>
    %34 = arith.select %33, %17, %31 : vector<8x128xi1>, vector<8x128xf32>
    %c0_15 = arith.constant 0 : index
    %c0_16 = arith.constant 0 : index
    %35 = vector.load %arg4[%c0_15, %c0_16] : memref<8x128xf32, #tpu.memory_space<vmem>>, vector<8x128xf32>
    tpu.vector_store %arg4[%c0_15, %c0_16], %34 {strides = array<i32>} : memref<8x128xf32, #tpu.memory_space<vmem>>, vector<8x128xf32>,
    return
  }
  func.func @transform_0(%arg0: i32) -> (i32, i32) {
    %c0_i32 = arith.constant 0 : i32
    %c0_i32_0 = arith.constant 0 : i32
    return %arg0, %c0_i32 : i32, i32
  }
  func.func @transform_1(%arg0: i32) -> (i32, i32) {
    %c0_i32 = arith.constant 0 : i32
    %c0_i32_0 = arith.constant 0 : i32
    %c0_i32_1 = arith.constant 0 : i32
    return %c0_i32, %c0_i32_0 : i32, i32
  }
  func.func @transform_2(%arg0: i32) -> (i32, i32) {
    %c0_i32 = arith.constant 0 : i32
    %c0_i32_0 = arith.constant 0 : i32
    %c0_i32_1 = arith.constant 0 : i32
    return %c0_i32, %c0_i32_0 : i32, i32
  }
  func.func @transform_3(%arg0: i32) -> (i32, i32) {
    %c0_i32 = arith.constant 0 : i32
    %c0_i32_0 = arith.constant 0 : i32
    return %arg0, %c0_i32 : i32, i32
  }
}

</mosaic_0001>

<llo_original>
// kernel: tpu_custom_call.1
$region0: #{tpu_custom_call.1}
  #allocation0 [shape = 'u32[]', space=smem, size = 0x4, offset = 0x4, fixed_abs, tag = 'smem constant byte address 0x4 - core index']
  #allocation1 [shape = 'u32[144,128]{1,0:T(1,128)}', space=vmem, size = 0x12000, scoped, tag = 'internal scratch']
  %s0 = inlined_call_operand.hbm [shape: f32[8,128], index: 0, kind: input, shape index: {}]
  %s1 = inlined_call_operand.hbm [shape: f32[384,128], index: 1, kind: input, shape index: {}]
  %s2 = inlined_call_operand.hbm [shape: f32[8,128], index: 2, kind: input, shape index: {}]
  %s3 = inlined_call_operand.hbm [shape: f32[8,128], index: 3, kind: output, shape index: {}]
  %s4 = sld [smem:[#allocation0]]
  $region34: #{tpu_custom_call.1} parent=0
    _
  %s6 = ssub.s32 1, %s4
  %s7 = scalar_select 0, %s6, %s4
  $region1: #{tpu_custom_call.1} parent=0
    #allocation2 [shape = 'u8[4096]{0}', space=vmem, size = 0x1000, scoped, tag = 'input window, operand 0, single buffered']
    #allocation3 [shape = 's32[1]{0}', space=sflag, size = 0x4, scoped, tag = 'scoped memory for tpu_custom_call.1']
    #allocation4 [shape = 's32[1]{0}', space=sflag, size = 0x4, scoped, tag = 'scoped memory for tpu_custom_call.1']
    #allocation5 [shape = 'u8[196608]{0}', space=vmem, size = 0x30000, scoped, tag = 'input window, operand 1, single buffered']
    #allocation6 [shape = 's32[1]{0}', space=sflag, size = 0x4, scoped, tag = 'scoped memory for tpu_custom_call.1']
    #allocation7 [shape = 'u8[4096]{0}', space=vmem, size = 0x1000, scoped, tag = 'input window, operand 2, single buffered']
    #allocation8 [shape = 'u8[4096]{0}', space=vmem, size = 0x1000, scoped, tag = 'output window, operand 0, single buffered']
    %8 = vsyncpa [#allocation3], 0
    %9 = vsyncpa [#allocation6], 0
    %10 = vsyncpa [#allocation4], 0
    // Predicated region
    $region2: #{tpu_custom_call.1} parent=1 // pred_check
      _
    $region3: #{tpu_custom_call.1} parent=1 // pred_check_branch
      %12 = sbr.rel (0) target = $region5
    $region4: #{tpu_custom_call.1} parent=1 // pred_region
      %s14 = ssub.s32 128, 128
      %15 = vsyncadd [#allocation3], %s14
      %s17 = sshll.u32 [#allocation2], 4
      %s18 = int_to_ptr.vmem [resolvable:$true] %s17
      %20 = dma.hbm_to_vmem [thread:$0]  %s0, 128, %s18, [#allocation3]
    $region5: #{tpu_custom_call.1} parent=1 // pred_fallthru
      _
    // Predicated region
    $region6: #{tpu_custom_call.1} parent=1 // pred_check
      _
    $region7: #{tpu_custom_call.1} parent=1 // pred_check_branch
      %22 = sbr.rel (0) target = $region9
    $region8: #{tpu_custom_call.1} parent=1 // pred_region
      %s24 = ssub.s32 6144, 6144
      %25 = vsyncadd [#allocation6], %s24
      %s26 = sshll.u32 [#allocation5], 4
      %s27 = int_to_ptr.vmem [resolvable:$true] %s26
      %32 = dma.hbm_to_vmem [thread:$0]  %s1, 6144, %s27, [#allocation6], 128, 128, 8
    $region9: #{tpu_custom_call.1} parent=1 // pred_fallthru
      _
    // Predicated region
    $region10: #{tpu_custom_call.1} parent=1 // pred_check
      _
    $region11: #{tpu_custom_call.1} parent=1 // pred_check_branch
      %34 = sbr.rel (0) target = $region13
    $region12: #{tpu_custom_call.1} parent=1 // pred_region
      %s36 = ssub.s32 128, 128
      %37 = vsyncadd [#allocation6], %s36
      %s39 = sshll.u32 [#allocation7], 4
      %s40 = int_to_ptr.vmem [resolvable:$true] %s39
      %42 = dma.hbm_to_vmem [thread:$0]  %s2, 128, %s40, [#allocation6]
    $region13: #{tpu_custom_call.1} parent=1 // pred_fallthru
      _
    // Predicated region
    $region14: #{tpu_custom_call.1} parent=1 // pred_check
      _
    $region15: #{tpu_custom_call.1} parent=1 // pred_check_branch
      %44 = sbr.rel (0) target = $region17
    $region16: #{tpu_custom_call.1} parent=1 // pred_region
      %45 = dma.done [#allocation3], 128
    $region17: #{tpu_custom_call.1} parent=1 // pred_fallthru
      _
    // Predicated region
    $region18: #{tpu_custom_call.1} parent=1 // pred_check
      _
    $region19: #{tpu_custom_call.1} parent=1 // pred_check_branch
      %47 = sbr.rel (0) target = $region21
    $region20: #{tpu_custom_call.1} parent=1 // pred_region
      %48 = dma.done [#allocation6], 6144
    $region21: #{tpu_custom_call.1} parent=1 // pred_fallthru
      _
    // Predicated region
    $region22: #{tpu_custom_call.1} parent=1 // pred_check
      _
    $region23: #{tpu_custom_call.1} parent=1 // pred_check_branch
      %50 = sbr.rel (0) target = $region25
    $region24: #{tpu_custom_call.1} parent=1 // pred_region
      %51 = dma.done [#allocation6], 128
    $region25: #{tpu_custom_call.1} parent=1 // pred_fallthru
      _
    %v52 = vld [vmem:[#allocation2] sm:$0xff]
    %v53 = vld [vmem:[#allocation5] sm:$0xff]
    %v54 = vld [vmem:[#allocation5 + $0x8] sm:$0xff]
    %v55 = vld [vmem:[#allocation5 + $0x10] sm:$0xff]
    %v56 = vld [vmem:[#allocation5 + $0x18] sm:$0xff]
    %v57 = vld [vmem:[#allocation5 + $0x20] sm:$0xff]
    %v58 = vld [vmem:[#allocation5 + $0x28] sm:$0xff]
    %v59 = vld [vmem:[#allocation5 + $0x30] sm:$0xff]
    %v60 = vld [vmem:[#allocation5 + $0x38] sm:$0xff]
    %v61 = vld [vmem:[#allocation5 + $0x40] sm:$0xff]
    %v62 = vld [vmem:[#allocation5 + $0x48] sm:$0xff]
    %v63 = vld [vmem:[#allocation5 + $0x50] sm:$0xff]
    %v64 = vld [vmem:[#allocation5 + $0x58] sm:$0xff]
    %v65 = vld [vmem:[#allocation5 + $0x60] sm:$0xff]
    %v66 = vld [vmem:[#allocation5 + $0x68] sm:$0xff]
    %v67 = vld [vmem:[#allocation5 + $0x70] sm:$0xff]
    %v68 = vld [vmem:[#allocation5 + $0x78] sm:$0xff]
    %v69 = vld [vmem:[#allocation5 + $0x80] sm:$0xff]
    %v70 = vld [vmem:[#allocation5 + $0x88] sm:$0xff]
    %v71 = vld [vmem:[#allocation5 + $0x90] sm:$0xff]
    %v72 = vld [vmem:[#allocation5 + $0x98] sm:$0xff]
    %v73 = vld [vmem:[#allocation5 + $0xa0] sm:$0xff]
    %v74 = vld [vmem:[#allocation5 + $0xa8] sm:$0xff]
    %v75 = vld [vmem:[#allocation5 + $0xb0] sm:$0xff]
    %v76 = vld [vmem:[#allocation5 + $0xb8] sm:$0xff]
    %v77 = vld [vmem:[#allocation5 + $0xc0] sm:$0xff]
    %v78 = vld [vmem:[#allocation5 + $0xc8] sm:$0xff]
    %v79 = vld [vmem:[#allocation5 + $0xd0] sm:$0xff]
    %v80 = vld [vmem:[#allocation5 + $0xd8] sm:$0xff]
    %v81 = vld [vmem:[#allocation5 + $0xe0] sm:$0xff]
    %v82 = vld [vmem:[#allocation5 + $0xe8] sm:$0xff]
    %v83 = vld [vmem:[#allocation5 + $0xf0] sm:$0xff]
    %v84 = vld [vmem:[#allocation5 + $0xf8] sm:$0xff]
    %v85 = vld [vmem:[#allocation5 + $0x100] sm:$0xff]
    %v86 = vld [vmem:[#allocation5 + $0x108] sm:$0xff]
    %v87 = vld [vmem:[#allocation5 + $0x110] sm:$0xff]
    %v88 = vld [vmem:[#allocation5 + $0x118] sm:$0xff]
    %v89 = vld [vmem:[#allocation5 + $0x120] sm:$0xff]
    %v90 = vld [vmem:[#allocation5 + $0x128] sm:$0xff]
    %v91 = vld [vmem:[#allocation5 + $0x130] sm:$0xff]
    %v92 = vld [vmem:[#allocation5 + $0x138] sm:$0xff]
    %v93 = vld [vmem:[#allocation5 + $0x140] sm:$0xff]
    %v94 = vld [vmem:[#allocation5 + $0x148] sm:$0xff]
    %v95 = vld [vmem:[#allocation5 + $0x150] sm:$0xff]
    %v96 = vld [vmem:[#allocation5 + $0x158] sm:$0xff]
    %v97 = vld [vmem:[#allocation5 + $0x160] sm:$0xff]
    %v98 = vld [vmem:[#allocation5 + $0x168] sm:$0xff]
    %v99 = vld [vmem:[#allocation5 + $0x170] sm:$0xff]
    %v100 = vld [vmem:[#allocation5 + $0x178] sm:$0xff]
    %v101 = vld [vmem:[#allocation7] sm:$0x1]
    %v102 = vld [vmem:[#allocation7 + $0x1] sm:$0x1]
    %v103 = vld [vmem:[#allocation7 + $0x2] sm:$0x1]
    %v104 = vlaneseq
    %v105 = vshrl.u32 %v104, 7
    %v106 = vsub.s32 0, %v105
    %v107 = vrot.slane %v101, %v106
    %108 = vmatprep.subr.mxu0 0.0
    %109 = vmatpush1.msra.mxu0 %v53
    %110 = vmatprep.subr.mxu0 0.0
    %111 = vmatpush1.msra.mxu0 %v54
    %112 = vmatprep.subr.mxu0 0.0
    %113 = vmatpush1.msra.mxu0 %v55
    %114 = vmatprep.subr.mxu0 0.0
    %115 = vmatpush1.msra.mxu0 %v56
    %116 = vmatprep.subr.mxu0 0.0
    %117 = vmatpush1.msra.mxu0 %v57
    %118 = vmatprep.subr.mxu0 0.0
    %119 = vmatpush1.msra.mxu0 %v58
    %120 = vmatprep.subr.mxu0 0.0
    %121 = vmatpush1.msra.mxu0 %v59
    %122 = vmatprep.subr.mxu0 0.0
    %123 = vmatpush1.msra.mxu0 %v60
    %124 = vmatprep.subr.mxu0 0.0
    %125 = vmatpush1.msra.mxu0 %v61
    %126 = vmatprep.subr.mxu0 0.0
    %127 = vmatpush1.msra.mxu0 %v62
    %128 = vmatprep.subr.mxu0 0.0
    %129 = vmatpush1.msra.mxu0 %v63
    %130 = vmatprep.subr.mxu0 0.0
    %131 = vmatpush1.msra.mxu0 %v64
    %132 = vmatprep.subr.mxu0 0.0
    %133 = vmatpush1.msra.mxu0 %v65
    %134 = vmatprep.subr.mxu0 0.0
    %135 = vmatpush1.msra.mxu0 %v66
    %136 = vmatprep.subr.mxu0 0.0
    %137 = vmatpush1.msra.mxu0 %v67
    %138 = vmatprep.subr.mxu0 0.0
    %139 = vmatpush1.msra.mxu0 %v68
    %140 = vmatprep.subr.mxu0 0.0
    %141 = vmatpush1.msra.mxu0 0.0
    %142 = vmatprep.subr.mxu0 0.0
    %143 = vmatpush1.msra.mxu0 0.0
    %144 = vmatprep.subr.mxu0 0.0
    %145 = vmatpush1.msra.mxu0 0.0
    %146 = vmatprep.subr.mxu0 0.0
    %147 = vmatpush1.msra.mxu0 0.0
    %148 = vmatprep.subr.mxu0 0.0
    %149 = vmatpush1.msra.mxu0 0.0
    %150 = vmatprep.subr.mxu0 0.0
    %151 = vmatpush1.msra.mxu0 0.0
    %152 = vmatprep.subr.mxu0 0.0
    %153 = vmatpush1.msra.mxu0 0.0
    %154 = vmatprep.subr.mxu0 0.0
    %155 = vmatpush1.msra.mxu0 0.0
    %156 = vmatprep.subr.mxu0 0.0
    %157 = vmatpush1.msra.mxu0 0.0
    %158 = vmatprep.subr.mxu0 0.0
    %159 = vmatpush1.msra.mxu0 0.0
    %160 = vmatprep.subr.mxu0 0.0
    %161 = vmatpush1.msra.mxu0 0.0
    %162 = vmatprep.subr.mxu0 0.0
    %163 = vmatpush1.msra.mxu0 0.0
    %164 = vmatprep.subr.mxu0 0.0
    %165 = vmatpush1.msra.mxu0 0.0
    %166 = vmatprep.subr.mxu0 0.0
    %167 = vmatpush1.msra.mxu0 0.0
    %168 = vmatprep.subr.mxu0 0.0
    %169 = vmatpush1.msra.mxu0 0.0
    %170 = vmatprep.subr.mxu0 0.0
    %171 = vmatpush1.msra.mxu0 0.0
    %172 = vmatprep.mubr.f32.mxu0 0.0
    %173 = vmatmul.mubr.f32.gmra.mrb[0].mxu0 %v52
    %v174 = vpop.f32.mrb[0].mxu0
    %v175 = vadd.f32 %v107, %v174
    %v176 = vpop.f32.mrb[0].mxu0
    %177 = vdwg.mxu0
    %v178 = vtanh.pop %v175
    %v179 = vlaneseq
    %v180 = vshrl.u32 %v179, 7
    %v181 = vsub.s32 0, %v180
    %v182 = vrot.slane %v102, %v181
    %183 = vmatprep.subr.mxu0 0.0
    %184 = vmatpush1.msra.mxu0 %v69
    %185 = vmatprep.subr.mxu0 0.0
    %186 = vmatpush1.msra.mxu0 %v70
    %187 = vmatprep.subr.mxu0 0.0
    %188 = vmatpush1.msra.mxu0 %v71
    %189 = vmatprep.subr.mxu0 0.0
    %190 = vmatpush1.msra.mxu0 %v72
    %191 = vmatprep.subr.mxu0 0.0
    %192 = vmatpush1.msra.mxu0 %v73
    %193 = vmatprep.subr.mxu0 0.0
    %194 = vmatpush1.msra.mxu0 %v74
    %195 = vmatprep.subr.mxu0 0.0
    %196 = vmatpush1.msra.mxu0 %v75
    %197 = vmatprep.subr.mxu0 0.0
    %198 = vmatpush1.msra.mxu0 %v76
    %199 = vmatprep.subr.mxu0 0.0
    %200 = vmatpush1.msra.mxu0 %v77
    %201 = vmatprep.subr.mxu0 0.0
    %202 = vmatpush1.msra.mxu0 %v78
    %203 = vmatprep.subr.mxu0 0.0
    %204 = vmatpush1.msra.mxu0 %v79
    %205 = vmatprep.subr.mxu0 0.0
    %206 = vmatpush1.msra.mxu0 %v80
    %207 = vmatprep.subr.mxu0 0.0
    %208 = vmatpush1.msra.mxu0 %v81
    %209 = vmatprep.subr.mxu0 0.0
    %210 = vmatpush1.msra.mxu0 %v82
    %211 = vmatprep.subr.mxu0 0.0
    %212 = vmatpush1.msra.mxu0 %v83
    %213 = vmatprep.subr.mxu0 0.0
    %214 = vmatpush1.msra.mxu0 %v84
    %215 = vmatprep.subr.mxu0 0.0
    %216 = vmatpush1.msra.mxu0 0.0
    %217 = vmatprep.subr.mxu0 0.0
    %218 = vmatpush1.msra.mxu0 0.0
    %219 = vmatprep.subr.mxu0 0.0
    %220 = vmatpush1.msra.mxu0 0.0
    %221 = vmatprep.subr.mxu0 0.0
    %222 = vmatpush1.msra.mxu0 0.0
    %223 = vmatprep.subr.mxu0 0.0
    %224 = vmatpush1.msra.mxu0 0.0
    %225 = vmatprep.subr.mxu0 0.0
    %226 = vmatpush1.msra.mxu0 0.0
    %227 = vmatprep.subr.mxu0 0.0
    %228 = vmatpush1.msra.mxu0 0.0
    %229 = vmatprep.subr.mxu0 0.0
    %230 = vmatpush1.msra.mxu0 0.0
    %231 = vmatprep.subr.mxu0 0.0
    %232 = vmatpush1.msra.mxu0 0.0
    %233 = vmatprep.subr.mxu0 0.0
    %234 = vmatpush1.msra.mxu0 0.0
    %235 = vmatprep.subr.mxu0 0.0
    %236 = vmatpush1.msra.mxu0 0.0
    %237 = vmatprep.subr.mxu0 0.0
    %238 = vmatpush1.msra.mxu0 0.0
    %239 = vmatprep.subr.mxu0 0.0
    %240 = vmatpush1.msra.mxu0 0.0
    %241 = vmatprep.subr.mxu0 0.0
    %242 = vmatpush1.msra.mxu0 0.0
    %243 = vmatprep.subr.mxu0 0.0
    %244 = vmatpush1.msra.mxu0 0.0
    %245 = vmatprep.subr.mxu0 0.0
    %246 = vmatpush1.msra.mxu0 0.0
    %247 = vmatprep.mubr.f32.mxu0 0.0
    %248 = vmatmul.mubr.f32.gmra.mrb[0].mxu0 %v178
    %v249 = vpop.f32.mrb[0].mxu0
    %v250 = vadd.f32 %v182, %v249
    %v251 = vpop.f32.mrb[0].mxu0
    %252 = vdwg.mxu0
    %v253 = vtanh.pop %v250
    %v254 = vlaneseq
    %v255 = vshrl.u32 %v254, 7
    %v256 = vsub.s32 0, %v255
    %v257 = vrot.slane %v103, %v256
    %258 = vmatprep.subr.mxu0 0.0
    %259 = vmatpush1.msra.mxu0 %v85
    %260 = vmatprep.subr.mxu0 0.0
    %261 = vmatpush1.msra.mxu0 %v86
    %262 = vmatprep.subr.mxu0 0.0
    %263 = vmatpush1.msra.mxu0 %v87
    %264 = vmatprep.subr.mxu0 0.0
    %265 = vmatpush1.msra.mxu0 %v88
    %266 = vmatprep.subr.mxu0 0.0
    %267 = vmatpush1.msra.mxu0 %v89
    %268 = vmatprep.subr.mxu0 0.0
    %269 = vmatpush1.msra.mxu0 %v90
    %270 = vmatprep.subr.mxu0 0.0
    %271 = vmatpush1.msra.mxu0 %v91
    %272 = vmatprep.subr.mxu0 0.0
    %273 = vmatpush1.msra.mxu0 %v92
    %274 = vmatprep.subr.mxu0 0.0
    %275 = vmatpush1.msra.mxu0 %v93
    %276 = vmatprep.subr.mxu0 0.0
    %277 = vmatpush1.msra.mxu0 %v94
    %278 = vmatprep.subr.mxu0 0.0
    %279 = vmatpush1.msra.mxu0 %v95
    %280 = vmatprep.subr.mxu0 0.0
    %281 = vmatpush1.msra.mxu0 %v96
    %282 = vmatprep.subr.mxu0 0.0
    %283 = vmatpush1.msra.mxu0 %v97
    %284 = vmatprep.subr.mxu0 0.0
    %285 = vmatpush1.msra.mxu0 %v98
    %286 = vmatprep.subr.mxu0 0.0
    %287 = vmatpush1.msra.mxu0 %v99
    %288 = vmatprep.subr.mxu0 0.0
    %289 = vmatpush1.msra.mxu0 %v100
    %290 = vmatprep.subr.mxu0 0.0
    %291 = vmatpush1.msra.mxu0 0.0
    %292 = vmatprep.subr.mxu0 0.0
    %293 = vmatpush1.msra.mxu0 0.0
    %294 = vmatprep.subr.mxu0 0.0
    %295 = vmatpush1.msra.mxu0 0.0
    %296 = vmatprep.subr.mxu0 0.0
    %297 = vmatpush1.msra.mxu0 0.0
    %298 = vmatprep.subr.mxu0 0.0
    %299 = vmatpush1.msra.mxu0 0.0
    %300 = vmatprep.subr.mxu0 0.0
    %301 = vmatpush1.msra.mxu0 0.0
    %302 = vmatprep.subr.mxu0 0.0
    %303 = vmatpush1.msra.mxu0 0.0
    %304 = vmatprep.subr.mxu0 0.0
    %305 = vmatpush1.msra.mxu0 0.0
    %306 = vmatprep.subr.mxu0 0.0
    %307 = vmatpush1.msra.mxu0 0.0
    %308 = vmatprep.subr.mxu0 0.0
    %309 = vmatpush1.msra.mxu0 0.0
    %310 = vmatprep.subr.mxu0 0.0
    %311 = vmatpush1.msra.mxu0 0.0
    %312 = vmatprep.subr.mxu0 0.0
    %313 = vmatpush1.msra.mxu0 0.0
    %314 = vmatprep.subr.mxu0 0.0
    %315 = vmatpush1.msra.mxu0 0.0
    %316 = vmatprep.subr.mxu0 0.0
    %317 = vmatpush1.msra.mxu0 0.0
    %318 = vmatprep.subr.mxu0 0.0
    %319 = vmatpush1.msra.mxu0 0.0
    %320 = vmatprep.subr.mxu0 0.0
    %321 = vmatpush1.msra.mxu0 0.0
    %322 = vmatprep.mubr.f32.mxu0 0.0
    %323 = vmatmul.mubr.f32.gmra.mrb[0].mxu0 %v253
    %v324 = vpop.f32.mrb[0].mxu0
    %v325 = vadd.f32 %v257, %v324
    %v326 = vpop.f32.mrb[0].mxu0
    %327 = vdwg.mxu0
    %v328 = vlaneseq
    %v329 = vand.u32 %v328, 127
    %vm330 = vcmp.lt.s32.totalorder %v329, 4
    %v331 = vsel %vm330, %v325, -1e+30
    %332 = vmax.xlane.f32.xlu0 %v331
    %v333 = vpop.xlane.xlu0 %332
    %v334 = vsub.f32 %v331, %v333
    %v335 = vmul.f32 %v334, 1.442695
    %v336 = vpow.pop %v335
    %337 = vadd.xlane.f32.xlu0 %v336
    %v338 = vpop.xlane.xlu0 %337
    %v339 = vrcp.pop %v338
    %v340 = vmul.f32 %v336, %v339
    %vm341 = vcmp.eq.s32.totalorder %v329, 4
    %v342 = vsel %vm341, %v325, %v340
    %343 = vst [vmem:[#allocation8] sm:$0xff] %v342
    // Predicated region
    $region26: #{tpu_custom_call.1} parent=1 // pred_check
      _
    $region27: #{tpu_custom_call.1} parent=1 // pred_check_branch
      %345 = sbr.rel (0) target = $region29
    $region28: #{tpu_custom_call.1} parent=1 // pred_region
      %s347 = ssub.s32 128, 128
      %348 = vsyncadd [#allocation4], %s347
      %s350 = sshll.u32 [#allocation8], 4
      %s351 = int_to_ptr.vmem [resolvable:$true] %s350
      %353 = dma.vmem_to_hbm [thread:$0]  %s351, 128, %s3, [#allocation4]
    $region29: #{tpu_custom_call.1} parent=1 // pred_fallthru
      _
    // Predicated region
    $region30: #{tpu_custom_call.1} parent=1 // pred_check
      _
    $region31: #{tpu_custom_call.1} parent=1 // pred_check_branch
      %355 = sbr.rel (0) target = $region33
    $region32: #{tpu_custom_call.1} parent=1 // pred_region
      %356 = dma.done [#allocation4], 128
    $region33: #{tpu_custom_call.1} parent=1 // pred_fallthru
      _
    %357 = vsyncpa [#allocation3], 1
    %358 = vsyncpa [#allocation6], 1
    %359 = vsyncpa [#allocation4], 1

</llo_original>
